<compile_context>
chip_gen: v7x
topology: tpu7x:2x2x1
jax: 0.10.0
libtpu: 0.0.40
codegen_flags: <defaults>
</compile_context>

<pallas_src>
import functools

import jax
import jax.numpy as jnp
from jax.experimental import pallas as pl
from jax.experimental.pallas import tpu as pltpu

_LANE = 128
_CHUNK_ROWS = 512  # in-kernel reduction chunk (multiple of 32 -> any dtype ok)


def _round_up(x, m):
    return (x + m - 1) // m * m


def _min_sublanes(dtype):
    # packed min-tile second-minor size: f32 -> 8, bf16 -> 16, int8/fp8 -> 32
    bits = jnp.dtype(dtype).itemsize * 8
    return max(8, (32 // bits) * 8)


def _bce_smooth_kernel(logits_ref, target_ref, partial_ref, *,
                       smoothing, pos_weight, chunk_rows, nchunks,
                       needs_mask, single_block, local_full_rows, lane_rem):
    zero = jnp.zeros((8, _LANE), jnp.float32)

    def chunk_loss(c):
        start = c * chunk_rows
        if not isinstance(start, int):
            start = pl.multiple_of(start, chunk_rows)
        x = logits_ref[pl.ds(start, chunk_rows), :].astype(jnp.float32)
        t = target_ref[pl.ds(start, chunk_rows), :].astype(jnp.float32)
        # deterministic label smoothing
        t = t * (1.0 - smoothing) + smoothing * 0.5
        # stable softplus(x) = max(x,0) + log1p(exp(-|x|)); softplus(-x) = sp - x
        sp = jnp.maximum(x, 0.0) + jnp.log1p(jnp.exp(-jnp.abs(x)))
        if pos_weight == 1.0:
            # pw==1: t*softplus(-x) + (1-t)*softplus(x) == softplus(x) - t*x
            return sp - t * x
        return sp * (1.0 - t + pos_weight * t) - pos_weight * t * x

    def fold(loss):
        # (chunk_rows,128) -> (8,128): (8,128) minor tiles map onto vregs, so
        # the reshape is free and the sum is pure VPU adds (no XLU reduce).
        return jnp.sum(loss.reshape(chunk_rows // 8, 8, _LANE), axis=0)

    def mask(loss, c):
        # Row-based validity vs. static per-block constants (no flat index,
        # no int32 overflow).  Only emitted for the last block.
        row = jax.lax.broadcasted_iota(jnp.int32, (chunk_rows, _LANE), 0)
        row = row + c * chunk_rows
        valid = row < local_full_rows
        if lane_rem:
            lane = jax.lax.broadcasted_iota(jnp.int32, (chunk_rows, _LANE), 1)
            valid = valid | ((row == local_full_rows) & (lane < lane_rem))
        # select (not multiply): garbage from the partial block may be NaN/Inf
        return jnp.where(valid, loss, 0.0)

    def body_plain(c, acc):
        return acc + fold(chunk_loss(c))

    def body_masked(c, acc):
        return acc + fold(mask(chunk_loss(c), c))

    def reduce(body):
        if nchunks == 1:
            return body(0, zero)
        return jax.lax.fori_loop(0, nchunks, body, zero)

    if not needs_mask:
        partial_ref[...] = reduce(body_plain)
    elif single_block:
        partial_ref[...] = reduce(body_masked)
    else:
        is_last = pl.program_id(0) == pl.num_programs(0) - 1

        @pl.when(jnp.logical_not(is_last))
        def _():
            partial_ref[...] = reduce(body_plain)

        @pl.when(is_last)
        def _():
            partial_ref[...] = reduce(body_masked)


def bce_with_logits_loss_smoothing(logits, target, *, smoothing=0.1,
                                   pos_weight=1.0, block_rows=4096):
    """Mean BCE-with-logits loss with deterministic label smoothing (Pallas)."""
    total_n = int(logits.size)
    full_rows, lane_rem = divmod(total_n, _LANE)
    rows = full_rows + (1 if lane_rem else 0)

    # Tile rows: multiple of the packed min-tile of the narrowest input dtype,
    # clamped to the (rounded-up) input, and a multiple of the reduction chunk.
    sub = max(_min_sublanes(logits.dtype), _min_sublanes(target.dtype))
    block_rows = max(sub, min(int(block_rows), _round_up(rows, sub)))
    block_rows = _round_up(block_rows, sub)
    if block_rows > _CHUNK_ROWS:
        block_rows = _round_up(block_rows, _CHUNK_ROWS)
        chunk_rows = _CHUNK_ROWS
    else:
        chunk_rows = block_rows
    nchunks = block_rows // chunk_rows

    num_blocks = pl.cdiv(rows, block_rows)
    needs_mask = (rows % block_rows != 0) or (lane_rem != 0)
    last_start = (num_blocks - 1) * block_rows
    local_full_rows = full_rows - last_start  # fully-valid rows in last block

    # Keep native dtypes (single f32 cast happens in-kernel) and avoid any
    # full-array pad for block alignment (partial last block + in-kernel mask).
    x_flat = logits.reshape(-1)
    t_flat = target.reshape(-1)
    if lane_rem:
        # TODO(synk): lane-ragged inputs (size % 128 != 0) pay one pad pass to
        # the next 128 multiple; the common divisible case has zero extra copies.
        pad = rows * _LANE - total_n
        x_flat = jnp.pad(x_flat, (0, pad))
        t_flat = jnp.pad(t_flat, (0, pad))
    x2 = x_flat.reshape(rows, _LANE)
    t2 = t_flat.reshape(rows, _LANE)

    kernel = functools.partial(
        _bce_smooth_kernel,
        smoothing=float(smoothing),
        pos_weight=float(pos_weight),
        chunk_rows=chunk_rows,
        nchunks=nchunks,
        needs_mask=needs_mask,
        single_block=(num_blocks == 1),
        local_full_rows=int(local_full_rows),
        lane_rem=int(lane_rem),
    )

    partials = pl.pallas_call(
        kernel,
        out_shape=jax.ShapeDtypeStruct((num_blocks * 8, _LANE), jnp.float32),
        grid_spec=pltpu.PrefetchScalarGridSpec(
            num_scalar_prefetch=0,
            grid=(num_blocks,),
            in_specs=[
                pl.BlockSpec((block_rows, _LANE), lambda i: (i, 0)),
                pl.BlockSpec((block_rows, _LANE), lambda i: (i, 0)),
            ],
            out_specs=pl.BlockSpec((8, _LANE), lambda i: (i, 0)),
        ),
        compiler_params=pltpu.CompilerParams(
            # no carried state -> embarrassingly parallel grid (v7x megacore)
            dimension_semantics=("parallel",),
        ),
    )(x2, t2)

    # tiny final reduction + mean normalization in the wrapper
    return jnp.sum(partials) / jnp.float32(total_n)


def _reference(logits, target, smoothing=0.1, pos_weight=1.0):
    x = logits.astype(jnp.float32)
    t = target.astype(jnp.float32)
    t = t * (1.0 - smoothing) + smoothing * 0.5
    sp_pos = jnp.maximum(x, 0.0) + jnp.log1p(jnp.exp(-jnp.abs(x)))
    sp_neg = sp_pos - x
    return jnp.mean(pos_weight * t * sp_neg + (1.0 - t) * sp_pos)


if __name__ == "__main__":
    ks = jax.random.split(jax.random.PRNGKey(0), 8)

    def run_check(kx, kt, shape, *, smoothing=0.1, pos_weight=1.0,
                  target_dtype=jnp.float32, block_rows=4096):
        logits = jax.random.normal(kx, shape, dtype=jnp.float32)
        target = (jax.random.uniform(kt, shape) > 0.5).astype(target_dtype)
        out = bce_with_logits_loss_smoothing(
            logits, target, smoothing=smoothing, pos_weight=pos_weight,
            block_rows=block_rows)
        out = jax.block_until_ready(out)
        ref = _reference(logits, target, smoothing, pos_weight)
        assert jnp.allclose(out, ref, atol=1e-5, rtol=1e-5), (shape, out, ref)

    # 1) module-default-style input: 128-divisible, single block, no mask
    run_check(ks[0], ks[1], (2, 4, 16, 16))
    # 2) ragged size + pos_weight + bf16 targets (lane remainder + row mask)
    run_check(ks[2], ks[3], (3, 5, 7, 11), pos_weight=2.5,
              target_dtype=jnp.bfloat16)
    # 3) multi-block grid with a partial final block (pl.when-gated mask)
    run_check(ks[4], ks[5], (4, 16, 18, 64), block_rows=256)
    # 4) default tile: in-kernel chunked (fori_loop) reduction path
    run_check(ks[6], ks[7], (4, 16, 18, 64))

    print("KERNEL_OK")
</pallas_src>

<mosaic_0001>
module attributes {stable_mosaic.version = 11 : i64} {
  func.func @_bce_smooth_kernel(%arg0: i32, %arg1: memref<16x128xf32, #tpu.memory_space<vmem>>, %arg2: memref<16x128xf32, #tpu.memory_space<vmem>>, %arg3: memref<8x128xf32, #tpu.memory_space<vmem>>) attributes {dimension_semantics = [#tpu.dimension_semantics<parallel>], iteration_bounds = array<i64: 1>, scalar_prefetch = 0 : i64, scratch_operands = 0 : i64, tpu.core_type = #tpu.core_type<tc>, window_params = [{transform_indices = @transform_0, window_bounds = array<i64: 16, 128>}, {transform_indices = @transform_1, window_bounds = array<i64: 16, 128>}, {transform_indices = @transform_2, window_bounds = array<i64: 8, 128>}]} {
    %cst = arith.constant 0.000000e+00 : f32
    %0 = vector.broadcast %cst : f32 to vector<8x128xf32>
    %c0 = arith.constant 0 : index
    %c0_0 = arith.constant 0 : index
    %1 = vector.load %arg1[%c0, %c0_0] : memref<16x128xf32, #tpu.memory_space<vmem>>, vector<16x128xf32>
    %c0_1 = arith.constant 0 : index
    %c0_2 = arith.constant 0 : index
    %2 = vector.load %arg2[%c0_1, %c0_2] : memref<16x128xf32, #tpu.memory_space<vmem>>, vector<16x128xf32>
    %cst_3 = arith.constant 0.899999976 : f32
    %3 = vector.broadcast %cst_3 : f32 to vector<16x128xf32>
    %4 = arith.mulf %2, %3 : vector<16x128xf32>
    %cst_4 = arith.constant 5.000000e-02 : f32
    %5 = vector.broadcast %cst_4 : f32 to vector<16x128xf32>
    %6 = arith.addf %4, %5 : vector<16x128xf32>
    %cst_5 = arith.constant 0.000000e+00 : f32
    %7 = vector.broadcast %cst_5 : f32 to vector<16x128xf32>
    %8 = arith.maximumf %1, %7 : vector<16x128xf32>
    %9 = math.absf %1 : vector<16x128xf32>
    %cst_6 = arith.constant 0.000000e+00 : f32
    %10 = vector.broadcast %cst_6 : f32 to vector<16x128xf32>
    %11 = arith.subf %10, %9 : vector<16x128xf32>
    %12 = math.exp %11 : vector<16x128xf32>
    %13 = math.log1p %12 : vector<16x128xf32>
    %14 = arith.addf %8, %13 : vector<16x128xf32>
    %15 = arith.mulf %6, %1 : vector<16x128xf32>
    %16 = arith.subf %14, %15 : vector<16x128xf32>
    %17 = vector.shape_cast %16 : vector<16x128xf32> to vector<2x8x128xf32>
    %cst_7 = arith.constant dense<0.000000e+00> : vector<8x128xf32>
    %18 = vector.multi_reduction <add>, %17, %cst_7 [0] : vector<2x8x128xf32> to vector<8x128xf32>
    %19 = arith.addf %0, %18 : vector<8x128xf32>
    %c0_8 = arith.constant 0 : index
    %c0_9 = arith.constant 0 : index
    %20 = vector.load %arg3[%c0_8, %c0_9] : memref<8x128xf32, #tpu.memory_space<vmem>>, vector<8x128xf32>
    tpu.vector_store %arg3[%c0_8, %c0_9], %19 {strides = array<i32>} : memref<8x128xf32, #tpu.memory_space<vmem>>, vector<8x128xf32>,
    return
  }
  func.func @transform_0(%arg0: i32) -> (i32, i32) {
    %c0_i32 = arith.constant 0 : i32
    %c0_i32_0 = arith.constant 0 : i32
    return %arg0, %c0_i32 : i32, i32
  }
  func.func @transform_1(%arg0: i32) -> (i32, i32) {
    %c0_i32 = arith.constant 0 : i32
    %c0_i32_0 = arith.constant 0 : i32
    return %arg0, %c0_i32 : i32, i32
  }
  func.func @transform_2(%arg0: i32) -> (i32, i32) {
    %c0_i32 = arith.constant 0 : i32
    %c0_i32_0 = arith.constant 0 : i32
    return %arg0, %c0_i32 : i32, i32
  }
}

</mosaic_0001>

<llo_original>
// kernel: tpu_custom_call.1
$region0: #{tpu_custom_call.1}
  #allocation0 [shape = 'u32[]', space=smem, size = 0x4, offset = 0x4, fixed_abs, tag = 'smem constant byte address 0x4 - core index']
  #allocation1 [shape = 'u32[144,128]{1,0:T(1,128)}', space=vmem, size = 0x12000, scoped, tag = 'internal scratch']
  %s0 = inlined_call_operand.hbm [shape: f32[16,128], index: 0, kind: input, shape index: {}]
  %s1 = inlined_call_operand.hbm [shape: f32[16,128], index: 1, kind: input, shape index: {}]
  %s2 = inlined_call_operand.hbm [shape: f32[8,128], index: 2, kind: output, shape index: {}]
  %s3 = sld [smem:[#allocation0]]
  $region26: #{tpu_custom_call.1} parent=0
    _
  %s5 = ssub.s32 1, %s3
  %s6 = scalar_select 0, %s5, %s3
  $region1: #{tpu_custom_call.1} parent=0
    #allocation2 [shape = 'u8[8192]{0}', space=vmem, size = 0x2000, scoped, tag = 'input window, operand 0, single buffered']
    #allocation3 [shape = 's32[1]{0}', space=sflag, size = 0x4, scoped, tag = 'scoped memory for tpu_custom_call.1']
    #allocation4 [shape = 's32[1]{0}', space=sflag, size = 0x4, scoped, tag = 'scoped memory for tpu_custom_call.1']
    #allocation5 [shape = 'u8[8192]{0}', space=vmem, size = 0x2000, scoped, tag = 'input window, operand 1, single buffered']
    #allocation6 [shape = 's32[1]{0}', space=sflag, size = 0x4, scoped, tag = 'scoped memory for tpu_custom_call.1']
    #allocation7 [shape = 'u8[4096]{0}', space=vmem, size = 0x1000, scoped, tag = 'output window, operand 0, single buffered']
    %7 = vsyncpa [#allocation3], 0
    %8 = vsyncpa [#allocation6], 0
    %9 = vsyncpa [#allocation4], 0
    // Predicated region
    $region2: #{tpu_custom_call.1} parent=1 // pred_check
      _
    $region3: #{tpu_custom_call.1} parent=1 // pred_check_branch
      %11 = sbr.rel (0) target = $region5
    $region4: #{tpu_custom_call.1} parent=1 // pred_region
      %s13 = ssub.s32 256, 256
      %14 = vsyncadd [#allocation3], %s13
      %s15 = sshll.u32 [#allocation2], 4
      %s16 = int_to_ptr.vmem [resolvable:$true] %s15
      %21 = dma.hbm_to_vmem [thread:$0]  %s0, 256, %s16, [#allocation3], 128, 128, 8
    $region5: #{tpu_custom_call.1} parent=1 // pred_fallthru
      _
    // Predicated region
    $region6: #{tpu_custom_call.1} parent=1 // pred_check
      _
    $region7: #{tpu_custom_call.1} parent=1 // pred_check_branch
      %23 = sbr.rel (0) target = $region9
    $region8: #{tpu_custom_call.1} parent=1 // pred_region
      %s25 = ssub.s32 256, 256
      %26 = vsyncadd [#allocation6], %s25
      %s27 = sshll.u32 [#allocation5], 4
      %s28 = int_to_ptr.vmem [resolvable:$true] %s27
      %33 = dma.hbm_to_vmem [thread:$0]  %s1, 256, %s28, [#allocation6], 128, 128, 8
    $region9: #{tpu_custom_call.1} parent=1 // pred_fallthru
      _
    // Predicated region
    $region10: #{tpu_custom_call.1} parent=1 // pred_check
      _
    $region11: #{tpu_custom_call.1} parent=1 // pred_check_branch
      %35 = sbr.rel (0) target = $region13
    $region12: #{tpu_custom_call.1} parent=1 // pred_region
      %36 = dma.done [#allocation3], 256
    $region13: #{tpu_custom_call.1} parent=1 // pred_fallthru
      _
    // Predicated region
    $region14: #{tpu_custom_call.1} parent=1 // pred_check
      _
    $region15: #{tpu_custom_call.1} parent=1 // pred_check_branch
      %38 = sbr.rel (0) target = $region17
    $region16: #{tpu_custom_call.1} parent=1 // pred_region
      %39 = dma.done [#allocation6], 256
    $region17: #{tpu_custom_call.1} parent=1 // pred_fallthru
      _
    %v40 = vld [vmem:[#allocation2] sm:$0xff]
    %v41 = vld [vmem:[#allocation2 + $0x8] sm:$0xff]
    %v42 = vld [vmem:[#allocation5] sm:$0xff]
    %v43 = vld [vmem:[#allocation5 + $0x8] sm:$0xff]
    %v44 = vmul.f32 %v42, 0.9
    %v45 = vmul.f32 %v43, 0.9
    %v46 = vadd.f32 %v44, 0.05
    %v47 = vadd.f32 %v45, 0.05
    %v48 = vmax.f32 %v40, 0.0
    %v49 = vmax.f32 %v41, 0.0
    %v50 = vand.u32 2147483647, %v40
    %v51 = vand.u32 2147483647, %v41
    %v52 = vsub.f32 0.0, %v50
    %v53 = vsub.f32 0.0, %v51
    %v54 = vmul.f32 %v52, 1.442695
    %v55 = vpow.pop %v54
    %v56 = vmul.f32 %v53, 1.442695
    %v57 = vpow.pop %v56
    %v58 = vadd.f32 %v55, 1.0
    %v59 = vlog2.pop %v58
    %v60 = vmul.f32 %v59, 0.6931472
    %v61 = vmul.f32 -0.5, %v55
    %v62 = vadd.f32 %v61, 1.0
    %v63 = vmul.f32 %v62, %v55
    %v64 = vand.u32 2147483647, %v55
    %vm65 = vcmp.lt.f32.partialorder %v64, 0.0004427343
    %v66 = vsel %vm65, %v63, %v60
    %v67 = vadd.f32 %v57, 1.0
    %v68 = vlog2.pop %v67
    %v69 = vmul.f32 %v68, 0.6931472
    %v70 = vmul.f32 -0.5, %v57
    %v71 = vadd.f32 %v70, 1.0
    %v72 = vmul.f32 %v71, %v57
    %v73 = vand.u32 2147483647, %v57
    %vm74 = vcmp.lt.f32.partialorder %v73, 0.0004427343
    %v75 = vsel %vm74, %v72, %v69
    %v76 = vadd.f32 %v48, %v66
    %v77 = vadd.f32 %v49, %v75
    %v78 = vmul.f32 %v46, %v40
    %v79 = vmul.f32 %v47, %v41
    %v80 = vsub.f32 %v76, %v78
    %v81 = vsub.f32 %v77, %v79
    %v82 = vadd.f32 %v80, %v81
    %v83 = vadd.f32 %v82, 0.0
    %84 = vst [vmem:[#allocation7] sm:$0xff] %v83
    // Predicated region
    $region18: #{tpu_custom_call.1} parent=1 // pred_check
      _
    $region19: #{tpu_custom_call.1} parent=1 // pred_check_branch
      %86 = sbr.rel (0) target = $region21
    $region20: #{tpu_custom_call.1} parent=1 // pred_region
      %s88 = ssub.s32 128, 128
      %89 = vsyncadd [#allocation4], %s88
      %s91 = sshll.u32 [#allocation7], 4
      %s92 = int_to_ptr.vmem [resolvable:$true] %s91
      %94 = dma.vmem_to_hbm [thread:$0]  %s92, 128, %s2, [#allocation4]
    $region21: #{tpu_custom_call.1} parent=1 // pred_fallthru
      _
    // Predicated region
    $region22: #{tpu_custom_call.1} parent=1 // pred_check
      _
    $region23: #{tpu_custom_call.1} parent=1 // pred_check_branch
      %96 = sbr.rel (0) target = $region25
    $region24: #{tpu_custom_call.1} parent=1 // pred_region
      %97 = dma.done [#allocation4], 128
    $region25: #{tpu_custom_call.1} parent=1 // pred_fallthru
      _
    %98 = vsyncpa [#allocation3], 1
    %99 = vsyncpa [#allocation6], 1
    %100 = vsyncpa [#allocation4], 1

</llo_original>
